<compile_context>
chip_gen: v6e
topology: v6e:2x2x1
jax: 0.10.0
libtpu: 0.0.40
codegen_flags: <defaults>
</compile_context>

<pallas_src>
import functools
import math

import jax
import jax.numpy as jnp
from jax.experimental import pallas as pl
from jax.experimental.pallas import tpu as pltpu


def _round_up(a: int, b: int) -> int:
    return ((a + b - 1) // b) * b


def _amp_to_db_kernel(floor_ref, x_ref, o_ref, *, multiplier, amin, db_offset,
                      has_top_db):
    # x_ref block shape: (1, TR, LANES) — one row-tile of one batch element.
    x = x_ref[...].astype(jnp.float32)
    x_db = multiplier * jnp.log10(jnp.maximum(x, amin)) - db_offset
    if has_top_db:
        b = pl.program_id(0)
        x_db = jnp.maximum(x_db, floor_ref[b])   # per-batch dB floor (SMEM scalar)
    o_ref[...] = x_db.astype(o_ref.dtype)


def amplitude_to_db(x, *, stype: str = "power", top_db=None, amin: float = 1e-10):
    """Pallas implementation of torchaudio.functional.amplitude_to_DB.

    x: (B, ...) array (power or magnitude). The max for the top_db clamp is
    taken over all non-batch dims, matching torchaudio's (C, F, T) reduction.
    """
    if top_db is not None and top_db < 0:
        raise ValueError("top_db must be positive value")
    multiplier = 10.0 if stype == "power" else 20.0
    ref_value = 1.0
    db_multiplier = math.log10(max(amin, ref_value))
    db_offset = multiplier * db_multiplier

    orig_shape = x.shape
    orig_dtype = x.dtype
    B = orig_shape[0]
    N = int(math.prod(orig_shape[1:]))

    # Lane-dense 2-D layout per batch element: (rows, LANES), LANES % 128 == 0.
    LANES = min(1024, _round_up(N, 128))
    R = -(-N // LANES)                      # rows per batch element
    if R <= 512:
        TR = R                              # block row dim == full array dim (allowed)
        R_pad = R
    else:
        TR = 512                            # multiple of 8, ~2 MiB f32 block
        R_pad = _round_up(R, TR)

    x_flat = x.reshape(B, N)
    pad = R_pad * LANES - N
    if pad:
        x_flat = jnp.pad(x_flat, ((0, 0), (0, pad)))
    x3 = x_flat.reshape(B, R_pad, LANES)

    # Per-batch dB floor (only used when top_db is set).
    has_top_db = top_db is not None
    if has_top_db:
        x_max = jnp.max(x.reshape(B, N).astype(jnp.float32), axis=-1)
        max_db = multiplier * jnp.log10(jnp.maximum(x_max, amin)) - db_offset
        floor = (max_db - top_db).astype(jnp.float32)
    else:
        floor = jnp.zeros((B,), dtype=jnp.float32)   # not read by the kernel

    kernel = functools.partial(
        _amp_to_db_kernel,
        multiplier=multiplier,
        amin=amin,
        db_offset=db_offset,
        has_top_db=has_top_db,
    )

    itemsize = jnp.dtype(orig_dtype).itemsize
    cost = pl.CostEstimate(
        flops=2 * B * N,
        transcendentals=B * N,
        bytes_accessed=2 * B * N * itemsize,
    )

    out3 = pl.pallas_call(
        kernel,
        out_shape=jax.ShapeDtypeStruct((B, R_pad, LANES), orig_dtype),
        grid_spec=pltpu.PrefetchScalarGridSpec(
            num_scalar_prefetch=1,
            grid=(B, R_pad // TR),
            in_specs=[pl.BlockSpec((1, TR, LANES),
                                   lambda b, r, floor_ref: (b, r, 0))],
            out_specs=pl.BlockSpec((1, TR, LANES),
                                   lambda b, r, floor_ref: (b, r, 0)),
        ),
        compiler_params=pltpu.CompilerParams(
            dimension_semantics=("parallel", "parallel"),
        ),
        cost_estimate=cost,
    )(floor, x3)

    out = out3.reshape(B, R_pad * LANES)
    if pad:
        out = out[:, :N]
    return out.reshape(orig_shape)


def _amplitude_to_db_ref(x, *, stype="power", top_db=None, amin=1e-10):
    """Pure-JAX reference, mirroring torchaudio.functional.amplitude_to_DB."""
    multiplier = 10.0 if stype == "power" else 20.0
    db_multiplier = math.log10(max(amin, 1.0))
    x_db = multiplier * jnp.log10(jnp.maximum(x, amin))
    x_db = x_db - multiplier * db_multiplier
    if top_db is not None:
        max_db = jnp.max(x_db, axis=tuple(range(1, x.ndim)), keepdims=True)
        x_db = jnp.maximum(x_db, max_db - top_db)
    return x_db.astype(x.dtype)


if __name__ == "__main__":
    key = jax.random.PRNGKey(0)
    B, C, F, T = 2, 4, 16, 16
    # Power-scale input: strictly positive with a wide dynamic range.
    x = jax.random.uniform(key, (B, C, F, T), dtype=jnp.float32,
                           minval=0.0, maxval=1.0) ** 4

    # Case 1: module defaults (stype="power", top_db=None)
    y0 = jax.block_until_ready(amplitude_to_db(x, stype="power", top_db=None))
    r0 = _amplitude_to_db_ref(x, stype="power", top_db=None)

    # Case 2: with a top_db floor (exercises the per-batch max / SMEM floor path)
    y1 = jax.block_until_ready(amplitude_to_db(x, stype="power", top_db=80.0))
    r1 = _amplitude_to_db_ref(x, stype="power", top_db=80.0)

    # Case 3: magnitude scale
    y2 = jax.block_until_ready(amplitude_to_db(x, stype="magnitude", top_db=80.0))
    r2 = _amplitude_to_db_ref(x, stype="magnitude", top_db=80.0)

    assert y0.shape == x.shape and y0.dtype == x.dtype
    assert jnp.allclose(y0, r0, atol=1e-4, rtol=1e-4)
    assert jnp.allclose(y1, r1, atol=1e-4, rtol=1e-4)
    assert jnp.allclose(y2, r2, atol=1e-4, rtol=1e-4)
    print("KERNEL_OK")
</pallas_src>

<mosaic_0001>
module attributes {stable_mosaic.version = 11 : i64} {
  func.func @_amp_to_db_kernel(%arg0: i32, %arg1: i32, %arg2: memref<2xf32, #tpu.memory_space<smem>>, %arg3: memref<1x1x1024xf32, #tpu.memory_space<vmem>>, %arg4: memref<1x1x1024xf32, #tpu.memory_space<vmem>>) attributes {dimension_semantics = [#tpu.dimension_semantics<parallel>, #tpu.dimension_semantics<parallel>], iteration_bounds = array<i64: 2, 1>, scalar_prefetch = 1 : i64, scratch_operands = 0 : i64, tpu.core_type = #tpu.core_type<tc>, window_params = [{transform_indices = @transform_0, window_bounds = array<i64: 1, 1, 1024>}, {transform_indices = @transform_1, window_bounds = array<i64: 1, 1, 1024>}]} {
    %c0 = arith.constant 0 : index
    %c0_0 = arith.constant 0 : index
    %c0_1 = arith.constant 0 : index
    %0 = vector.load %arg3[%c0, %c0_0, %c0_1] : memref<1x1x1024xf32, #tpu.memory_space<vmem>>, vector<1x1x1024xf32>
    %cst = arith.constant 1.000000e-10 : f32
    %1 = vector.broadcast %cst : f32 to vector<1x1x1024xf32>
    %2 = arith.maximumf %0, %1 : vector<1x1x1024xf32>
    %3 = math.log %2 : vector<1x1x1024xf32>
    %cst_2 = arith.constant 0.434294492 : f32
    %4 = vector.broadcast %cst_2 : f32 to vector<1x1x1024xf32>
    %5 = arith.mulf %3, %4 : vector<1x1x1024xf32>
    %cst_3 = arith.constant 1.000000e+01 : f32
    %6 = vector.broadcast %cst_3 : f32 to vector<1x1x1024xf32>
    %7 = arith.mulf %6, %5 : vector<1x1x1024xf32>
    %cst_4 = arith.constant 0.000000e+00 : f32
    %8 = vector.broadcast %cst_4 : f32 to vector<1x1x1024xf32>
    %9 = arith.subf %7, %8 : vector<1x1x1024xf32>
    %c0_5 = arith.constant 0 : index
    %c0_6 = arith.constant 0 : index
    %c0_7 = arith.constant 0 : index
    %10 = vector.load %arg4[%c0_5, %c0_6, %c0_7] : memref<1x1x1024xf32, #tpu.memory_space<vmem>>, vector<1x1x1024xf32>
    tpu.vector_store %arg4[%c0_5, %c0_6, %c0_7], %9 {strides = array<i32>} : memref<1x1x1024xf32, #tpu.memory_space<vmem>>, vector<1x1x1024xf32>,
    return
  }
  func.func @transform_0(%arg0: i32, %arg1: i32, %arg2: memref<2xf32, #tpu.memory_space<smem>>) -> (i32, i32, i32) {
    %c0_i32 = arith.constant 0 : i32
    %c0_i32_0 = arith.constant 0 : i32
    return %arg0, %arg1, %c0_i32 : i32, i32, i32
  }
  func.func @transform_1(%arg0: i32, %arg1: i32, %arg2: memref<2xf32, #tpu.memory_space<smem>>) -> (i32, i32, i32) {
    %c0_i32 = arith.constant 0 : i32
    %c0_i32_0 = arith.constant 0 : i32
    return %arg0, %arg1, %c0_i32 : i32, i32, i32
  }
}

</mosaic_0001>

<llo_original>
// kernel: tpu_custom_call.1
$region0: #{tpu_custom_call.1}
  #allocation0 [shape = 'u32[]', space=smem, size = 0x4, offset = 0x4, fixed_abs, tag = 'smem constant byte address 0x4 - core index']
  #allocation1 [shape = 'u32[144,128]{1,0:T(1,128)}', space=vmem, size = 0x12000, scoped, tag = 'internal scratch']
  #allocation2 [shape = 's32[1]{0}', space=sflag, size = 0x4, scoped, tag = 'scoped memory for tpu_custom_call.1']
  #allocation3 [shape = 'u8[512]{0}', space=smem, size = 0x200, scoped, tag = 'prefetched SMEM operand 0']
  %s0 = inlined_call_operand.hbm [shape: f32[2], index: 0, kind: input, shape index: {}]
  %s1 = inlined_call_operand.hbm [shape: f32[2,1,1024], index: 1, kind: input, shape index: {}]
  %s2 = inlined_call_operand.hbm [shape: f32[2,1,1024], index: 2, kind: output, shape index: {}]
  %s3 = sld [smem:[#allocation0]]
  $region41: #{tpu_custom_call.1} parent=0
    _
  %s5 = ssub.s32 1, %s3
  %s6 = scalar_select 0, %s5, %s3
  %8 = dma.hbm_to_smem %s0, 16, [#allocation3], [#allocation2]
  %9 = dma.done [#allocation2], 16
  %10 = sfence
  $region1: #{tpu_custom_call.1} parent=0
    #allocation4 [shape = 'u8[8192]{0}', space=vmem, size = 0x2000, scoped, tag = 'input window, operand 1']
    #allocation5 [shape = 's32[2]{0}', space=sflag, size = 0x8, scoped, tag = 'scoped memory for tpu_custom_call.1']
    #allocation6 [shape = 's32[2]{0}', space=sflag, size = 0x8, scoped, tag = 'scoped memory for tpu_custom_call.1']
    #allocation7 [shape = 'u8[8192]{0}', space=vmem, size = 0x2000, scoped, tag = 'output window, operand 0']
    %11 = vsyncpa [#allocation5], 0
    %s12 = scalar_lea.sflag [#allocation5], 1
    %13 = vsyncpa %s12, 0
    %14 = vsyncpa [#allocation6], 0
    %s15 = scalar_lea.sflag [#allocation6], 1
    %16 = vsyncpa %s15, 0
    loop: start=0, step=1, limit=4
    $region2: #{tpu_custom_call.1} parent=1 // loop_pre_header
      _
    $region3: #{tpu_custom_call.1} parent=1 // loop_header
      %s18 = sphi 0, %s22
      %p19 = scmp.ge.s32.totalorder %s18, 4
      %s25 = sphi 0, %s37
      %s26 = sphi 0, %s33
      %s27 = sphi 0, %s25
      %s28 = sphi 0, %s26
      %s29 = sphi 0, %s27
      %s30 = sphi 0, %s28
      %s42 = sphi 0, %s44
      %s45 = sphi 0, %s42
      %s46 = sphi 0, %s45
      %s62 = sphi 0, %s46
      %s70 = sphi 0, %s72
      %s73 = sphi 0, %s70
      %s74 = sphi 0, %s73
      %s90 = sphi 0, %s74
    $region4: #{tpu_custom_call.1} parent=1 // loop_header_branch
      %21 = sbr.rel (%p19) target = $region8
    $region5: #{tpu_custom_call.1} parent=1 // loop_body
      %s23 = ssub.s32 %s18, 1
      %s24 = ssub.s32 %s18, 2
      %s31 = sadd.s32 1, %s26
      %p32 = scmp.ge.s32.totalorder %s31, 1
      %s33 = scalar_select %p32, 0, %s31
      %s34 = sadd.s32 1, %s25
      %s35 = scalar_select %p32, %s34, %s25
      %p36 = scmp.ge.s32.totalorder %s35, 2
      %s37 = scalar_select %p36, 0, %s35
      %s38 = ssub.s32 %s25, %s37
      %s39 = ssub.s32 %s26, %s33
      %s40 = sor.u32 %s38, %s39
      %p41 = scmp.eq.s32.totalorder %s40, 0
      %s43 = sadd.s32 %s42, 1
      %s44 = scalar_select %p41, %s42, %s43
      %p47 = pneg %p41
      %p48 = scmp.eq.s32.totalorder %s18, 1
      %p49 = por %p47, %p48
      %p50 = scmp.ne.s32.totalorder %s42, %s45
      %p51 = scmp.eq.s32.totalorder %s18, 0
      %p52 = por %p50, %p51
      %p53 = scmp.ne.s32.totalorder %s42, %s45
      %p54 = scmp.eq.s32.totalorder %s23, 1
      %p55 = por %p53, %p54
      %p56 = scmp.ne.s32.totalorder %s45, %s46
      %p57 = scmp.eq.s32.totalorder %s23, 0
      %p58 = por %p56, %p57
      %p59 = scmp.ne.s32.totalorder %s45, %s46
      %p60 = scmp.eq.s32.totalorder %s24, 1
      %p61 = por %p59, %p60
      %p63 = scmp.ne.s32.totalorder %s46, %s62
      %p64 = scmp.eq.s32.totalorder %s24, 0
      %p65 = por %p63, %p64
      %s66 = ssub.s32 %s25, %s37
      %s67 = ssub.s32 %s26, %s33
      %s68 = sor.u32 %s66, %s67
      %p69 = scmp.eq.s32.totalorder %s68, 0
      %s71 = sadd.s32 %s70, 1
      %s72 = scalar_select %p69, %s70, %s71
      %p75 = pneg %p69
      %p76 = scmp.eq.s32.totalorder %s18, 1
      %p77 = por %p75, %p76
      %p78 = scmp.ne.s32.totalorder %s70, %s73
      %p79 = scmp.eq.s32.totalorder %s18, 0
      %p80 = por %p78, %p79
      %p81 = scmp.ne.s32.totalorder %s70, %s73
      %p82 = scmp.eq.s32.totalorder %s23, 1
      %p83 = por %p81, %p82
      %p84 = scmp.ne.s32.totalorder %s73, %s74
      %p85 = scmp.eq.s32.totalorder %s23, 0
      %p86 = por %p84, %p85
      %p87 = scmp.ne.s32.totalorder %s73, %s74
      %p88 = scmp.eq.s32.totalorder %s24, 1
      %p89 = por %p87, %p88
      %p91 = scmp.ne.s32.totalorder %s74, %s90
      %p92 = scmp.eq.s32.totalorder %s24, 0
      %p93 = por %p91, %p92
      %p94 = scmp.le.s32.totalorder 1, %s18
      %p95 = scmp.lt.s32.totalorder %s18, 3
      %p96 = pnand %p94, %p95
      %p97 = pneg %p96
      // Predicated region
      $region9: #{tpu_custom_call.1} parent=5 // pred_check
        _
      $region10: #{tpu_custom_call.1} parent=5 // pred_check_branch
        %99 = sbr.rel (%p96) target = $region12
      $region11: #{tpu_custom_call.1} parent=5 // pred_region
        %s100 = ssub.s32 %s18, 1
      $region12: #{tpu_custom_call.1} parent=5 // pred_fallthru
        _
      %p101 = scmp.lt.s32.totalorder %s18, 2
      // Predicated region
      $region13: #{tpu_custom_call.1} parent=5 // pred_check
        %p102 = pneg %p101
      $region14: #{tpu_custom_call.1} parent=5 // pred_check_branch
        %104 = sbr.rel (%p102) target = $region16
      $region15: #{tpu_custom_call.1} parent=5 // pred_region
        // Predicated region
        $region17: #{tpu_custom_call.1} parent=15 // pred_check
          %p105 = pneg %p52
        $region18: #{tpu_custom_call.1} parent=15 // pred_check_branch
          %107 = sbr.rel (%p105) target = $region20
        $region19: #{tpu_custom_call.1} parent=15 // pred_region
          %s108 = sand.u32 %s42, 1
          %s109 = scalar_lea.sflag [#allocation5], %s108
          %s110 = sand.u32 %s42, 1
          %s111 = smul.addr %s110, 8
          %s112 = scalar_lea.vmem [#allocation4], %s111
          %s114 = ssub.s32 128, 128
          %115 = vsyncadd %s109, %s114
          %s116 = smul.addr %s26, 8
          %s117 = smul.addr %s25, 8
          %s118 = sadd.s32 %s116, %s117
          %s119 = smul.addr %s118, 16
          %s120 = scalar_lea.hbm %s1, %s119
          %s122 = sshll.u32 %s112, 4
          %s123 = int_to_ptr.vmem [resolvable:$true] %s122
          %125 = dma.hbm_to_vmem [thread:$0]  %s120, 128, %s123, %s109
        $region20: #{tpu_custom_call.1} parent=15 // pred_fallthru
          _
      $region16: #{tpu_custom_call.1} parent=5 // pred_fallthru
        _
      %p126 = scmp.le.s32.totalorder 1, %s18
      %p127 = scmp.lt.s32.totalorder %s18, 3
      %p128 = pnand %p126, %p127
      %p129 = pneg %p128
      // Predicated region
      $region21: #{tpu_custom_call.1} parent=5 // pred_check
        _
      $region22: #{tpu_custom_call.1} parent=5 // pred_check_branch
        %131 = sbr.rel (%p128) target = $region24
      $region23: #{tpu_custom_call.1} parent=5 // pred_region
        %s132 = ssub.s32 %s18, 1
        %s133 = sand.u32 %s45, 1
        %s134 = scalar_lea.sflag [#allocation5], %s133
        %s135 = sand.u32 %s45, 1
        %s136 = smul.addr %s135, 8
        %s137 = scalar_lea.vmem [#allocation4], %s136
        // Predicated region
        $region25: #{tpu_custom_call.1} parent=23 // pred_check
          %p138 = pneg %p58
        $region26: #{tpu_custom_call.1} parent=23 // pred_check_branch
          %140 = sbr.rel (%p138) target = $region28
        $region27: #{tpu_custom_call.1} parent=23 // pred_region
          %141 = dma.done %s134, 128
        $region28: #{tpu_custom_call.1} parent=23 // pred_fallthru
          _
        %s142 = sand.u32 %s45, 1
        %s143 = scalar_lea.sflag [#allocation5], %s142
        %s144 = sand.u32 %s45, 1
        %s145 = smul.addr %s144, 8
        %s146 = scalar_lea.vmem [#allocation4], %s145
        %p147 = pneg %p58
        %p148 = pneg %p55
        %p149 = pneg %p86
        %p150 = pneg %p83
        %s151 = sand.u32 %s73, 1
        %s152 = scalar_lea.sflag [#allocation6], %s151
        %s153 = sand.u32 %s73, 1
        %s154 = smul.addr %s153, 8
        %s155 = scalar_lea.vmem [#allocation7], %s154
        %v156 = vld [vmem:[%s137] sm:$0xff]
        %v157 = vmax.f32 %v156, 1e-10
        %v158 = vlog2.pop %v157
        %v159 = vmul.f32 %v158, 0.6931472
        %v160 = vmul.f32 %v159, 0.4342945
        %v161 = vmul.f32 %v160, 10.0
        %162 = vst [vmem:[%s155] sm:$0xff] %v161
        %s163 = sand.u32 %s73, 1
        %s164 = scalar_lea.sflag [#allocation6], %s163
        %s165 = sand.u32 %s73, 1
        %s166 = smul.addr %s165, 8
        %s167 = scalar_lea.vmem [#allocation7], %s166
        // Predicated region
        $region29: #{tpu_custom_call.1} parent=23 // pred_check
          %p168 = pneg %p83
        $region30: #{tpu_custom_call.1} parent=23 // pred_check_branch
          %170 = sbr.rel (%p168) target = $region32
        $region31: #{tpu_custom_call.1} parent=23 // pred_region
          %s172 = ssub.s32 128, 128
          %173 = vsyncadd %s164, %s172
          %s174 = smul.addr %s28, 8
          %s175 = smul.addr %s27, 8
          %s176 = sadd.s32 %s174, %s175
          %s177 = smul.addr %s176, 16
          %s178 = scalar_lea.hbm %s2, %s177
          %s180 = sshll.u32 %s167, 4
          %s181 = int_to_ptr.vmem [resolvable:$true] %s180
          %183 = dma.vmem_to_hbm [thread:$0]  %s181, 128, %s178, %s164
        $region32: #{tpu_custom_call.1} parent=23 // pred_fallthru
          _
      $region24: #{tpu_custom_call.1} parent=5 // pred_fallthru
        _
      %p184 = scmp.le.s32.totalorder 2, %s18
      // Predicated region
      $region33: #{tpu_custom_call.1} parent=5 // pred_check
        %p185 = pneg %p184
      $region34: #{tpu_custom_call.1} parent=5 // pred_check_branch
        %187 = sbr.rel (%p185) target = $region36
      $region35: #{tpu_custom_call.1} parent=5 // pred_region
        %s188 = ssub.s32 %s18, 2
        // Predicated region
        $region37: #{tpu_custom_call.1} parent=35 // pred_check
          %p189 = pneg %p89
        $region38: #{tpu_custom_call.1} parent=35 // pred_check_branch
          %191 = sbr.rel (%p189) target = $region40
        $region39: #{tpu_custom_call.1} parent=35 // pred_region
          %s192 = sand.u32 %s74, 1
          %s193 = scalar_lea.sflag [#allocation6], %s192
          %s194 = sand.u32 %s74, 1
          %s195 = smul.addr %s194, 8
          %s196 = scalar_lea.vmem [#allocation7], %s195
          %197 = dma.done %s193, 128
        $region40: #{tpu_custom_call.1} parent=35 // pred_fallthru
          _
      $region36: #{tpu_custom_call.1} parent=5 // pred_fallthru
        _
    $region6: #{tpu_custom_call.1} parent=1 // loop_footer
      %s22 = sadd.s32 1, %s18
    $region7: #{tpu_custom_call.1} parent=1 // loop_footer_branch
      %17 = sbr.rel target = $region3
    $region8: #{tpu_custom_call.1} parent=1 // loop_exit
      _
    %198 = vsyncpa [#allocation5], 1
    %s199 = scalar_lea.sflag [#allocation5], 1
    %200 = vsyncpa %s199, 1
    %201 = vsyncpa [#allocation6], 1
    %s202 = scalar_lea.sflag [#allocation6], 1
    %203 = vsyncpa %s202, 1

</llo_original>
